<compile_context>
chip_gen: v7x
topology: tpu7x:2x2x1
jax: 0.10.0
libtpu: 0.0.40
codegen_flags: <defaults>
</compile_context>

<pallas_src>
import functools

import jax
import jax.numpy as jnp
from jax.experimental import pallas as pl
from jax.experimental.pallas import tpu as pltpu


def estimator_length_kernel(x_ref, w1_ref, b1_ref, w2_ref, b2_ref, out_ref):
    """Fused MLP head for one batch tile.

    Refs (all VMEM, weights pre-transposed so matmuls are `x @ W`):
      x_ref  : [TB, dim_z]
      w1_ref : [dim_z, H]   b1_ref : [1, H]     (H = dim_z // 4)
      w2_ref : [H, 1]       b2_ref : [1, 1]
      out_ref: [TB, 1]
    """
    x = x_ref[...]
    h = jnp.maximum(
        jnp.dot(x, w1_ref[...], preferred_element_type=jnp.float32) + b1_ref[...],
        0.0)
    out_ref[...] = (
        jnp.dot(h, w2_ref[...], preferred_element_type=jnp.float32) + b2_ref[...])


def estimator_length_forward(x, params, *, batch_tile=8):
    """JAX wrapper: pads batch to the tile size, runs the fused kernel."""
    x = x.astype(jnp.float32)
    B, dim_z = x.shape
    H = params["w1"].shape[1]

    # Pad batch up to a multiple of the tile (sublane-friendly), slice back.
    TB = batch_tile
    B_pad = pl.cdiv(B, TB) * TB
    if B_pad != B:
        x = jnp.pad(x, ((0, B_pad - B), (0, 0)))

    grid = (B_pad // TB,)

    flops = 2 * B_pad * dim_z * H + 2 * B_pad * H * 1
    bytes_accessed = 4 * (B_pad * dim_z + dim_z * H + H + H * 1 + 1 + B_pad * 1)
    cost = pl.CostEstimate(flops=flops, transcendentals=0,
                           bytes_accessed=bytes_accessed)

    out = pl.pallas_call(
        estimator_length_kernel,
        out_shape=jax.ShapeDtypeStruct((B_pad, 1), jnp.float32),
        grid=grid,
        in_specs=[
            pl.BlockSpec((TB, dim_z), lambda i: (i, 0)),   # x: tiled on batch
            pl.BlockSpec((dim_z, H), lambda i: (0, 0)),    # w1: replicated
            pl.BlockSpec((1, H), lambda i: (0, 0)),        # b1
            pl.BlockSpec((H, 1), lambda i: (0, 0)),        # w2
            pl.BlockSpec((1, 1), lambda i: (0, 0)),        # b2
        ],
        out_specs=pl.BlockSpec((TB, 1), lambda i: (i, 0)),
        compiler_params=pltpu.CompilerParams(
            dimension_semantics=("parallel",)),
        cost_estimate=cost,
    )(x, params["w1"], params["b1"], params["w2"], params["b2"])

    return out[:B]


def init_params(key, dim_z):
    """PyTorch-like uniform init. Weights stored transposed (so kernel does
    x @ W); biases are [1, F] rows."""
    H = dim_z // 4

    def uni(k, shape, fan_in):
        bound = 1.0 / jnp.sqrt(jnp.float32(fan_in))
        return jax.random.uniform(k, shape, jnp.float32, -bound, bound)

    ks = jax.random.split(key, 4)
    return {
        # nn.Linear(dim_z, dim_z//4): weight [H, dim_z] -> stored [dim_z, H]
        "w1": uni(ks[0], (dim_z, H), dim_z),
        "b1": uni(ks[1], (1, H), dim_z),
        # nn.Linear(dim_z//4, 1): weight [1, H] -> stored [H, 1]
        "w2": uni(ks[2], (H, 1), H),
        "b2": uni(ks[3], (1, 1), H),
    }


def reference_forward(x, params):
    """Pure-JAX reference (same math, no Pallas)."""
    h = jax.nn.relu(x @ params["w1"] + params["b1"])
    return h @ params["w2"] + params["b2"]


if __name__ == "__main__":
    # Small shapes consistent with the module.
    B = 8
    dim_z = 32      # -> hidden = dim_z // 4 = 8, output = 1

    key = jax.random.PRNGKey(0)
    k_p, k_x = jax.random.split(key, 2)

    params = init_params(k_p, dim_z)
    x = jax.random.normal(k_x, (B, dim_z), jnp.float32)

    out = estimator_length_forward(x, params)
    out = jax.block_until_ready(out)
    assert out.shape == (B, 1), out.shape

    ref = jax.block_until_ready(reference_forward(x, params))
    assert jnp.allclose(out, ref, atol=1e-5, rtol=1e-5), \
        float(jnp.max(jnp.abs(out - ref)))

    print("KERNEL_OK")
</pallas_src>

<mosaic_0001>
module attributes {stable_mosaic.version = 11 : i64} {
  func.func @estimator_length_kernel(%arg0: i32, %arg1: memref<8x32xf32, #tpu.memory_space<vmem>>, %arg2: memref<32x8xf32, #tpu.memory_space<vmem>>, %arg3: memref<1x8xf32, #tpu.memory_space<vmem>>, %arg4: memref<8x1xf32, #tpu.memory_space<vmem>>, %arg5: memref<1x1xf32, #tpu.memory_space<vmem>>, %arg6: memref<8x1xf32, #tpu.memory_space<vmem>>) attributes {dimension_semantics = [#tpu.dimension_semantics<parallel>], iteration_bounds = array<i64: 1>, scalar_prefetch = 0 : i64, scratch_operands = 0 : i64, tpu.core_type = #tpu.core_type<tc>, window_params = [{transform_indices = @transform_0, window_bounds = array<i64: 8, 32>}, {pipeline_mode = #tpu.pipeline_mode<synchronous>, transform_indices = @transform_1, window_bounds = array<i64: 32, 8>}, {pipeline_mode = #tpu.pipeline_mode<synchronous>, transform_indices = @transform_2, window_bounds = array<i64: 1, 8>}, {pipeline_mode = #tpu.pipeline_mode<synchronous>, transform_indices = @transform_3, window_bounds = array<i64: 8, 1>}, {pipeline_mode = #tpu.pipeline_mode<synchronous>, transform_indices = @transform_4, window_bounds = array<i64: 1, 1>}, {transform_indices = @transform_5, window_bounds = array<i64: 8, 1>}]} {
    %c0 = arith.constant 0 : index
    %c0_0 = arith.constant 0 : index
    %0 = vector.load %arg1[%c0, %c0_0] : memref<8x32xf32, #tpu.memory_space<vmem>>, vector<8x32xf32>
    %c0_1 = arith.constant 0 : index
    %c0_2 = arith.constant 0 : index
    %1 = vector.load %arg2[%c0_1, %c0_2] : memref<32x8xf32, #tpu.memory_space<vmem>>, vector<32x8xf32>
    %cst = arith.constant dense<0.000000e+00> : vector<8x8xf32>
    %2 = tpu.matmul %0, %1, %cst {dimension_numbers = #tpu.dot_dimension_numbers<[1], [0], [0], [1], [0, 0, 1, 1], [], []>} : vector<8x32xf32>, vector<32x8xf32>, vector<8x8xf32> -> vector<8x8xf32>
    %c0_3 = arith.constant 0 : index
    %c0_4 = arith.constant 0 : index
    %3 = vector.load %arg3[%c0_3, %c0_4] : memref<1x8xf32, #tpu.memory_space<vmem>>, vector<1x8xf32>
    %4 = vector.broadcast %3 : vector<1x8xf32> to vector<8x8xf32>
    %5 = arith.addf %2, %4 : vector<8x8xf32>
    %cst_5 = arith.constant 0.000000e+00 : f32
    %6 = vector.broadcast %cst_5 : f32 to vector<8x8xf32>
    %7 = arith.maximumf %5, %6 : vector<8x8xf32>
    %c0_6 = arith.constant 0 : index
    %c0_7 = arith.constant 0 : index
    %8 = vector.load %arg4[%c0_6, %c0_7] : memref<8x1xf32, #tpu.memory_space<vmem>>, vector<8x1xf32>
    %cst_8 = arith.constant dense<0.000000e+00> : vector<8x1xf32>
    %9 = tpu.matmul %7, %8, %cst_8 {dimension_numbers = #tpu.dot_dimension_numbers<[1], [0], [0], [1], [0, 0, 1, 1], [], []>} : vector<8x8xf32>, vector<8x1xf32>, vector<8x1xf32> -> vector<8x1xf32>
    %c0_9 = arith.constant 0 : index
    %c0_10 = arith.constant 0 : index
    %10 = vector.load %arg5[%c0_9, %c0_10] : memref<1x1xf32, #tpu.memory_space<vmem>>, vector<1x1xf32>
    %11 = vector.broadcast %10 : vector<1x1xf32> to vector<8x1xf32>
    %12 = arith.addf %9, %11 : vector<8x1xf32>
    %c0_11 = arith.constant 0 : index
    %c0_12 = arith.constant 0 : index
    %13 = vector.load %arg6[%c0_11, %c0_12] : memref<8x1xf32, #tpu.memory_space<vmem>>, vector<8x1xf32>
    tpu.vector_store %arg6[%c0_11, %c0_12], %12 {strides = array<i32>} : memref<8x1xf32, #tpu.memory_space<vmem>>, vector<8x1xf32>,
    return
  }
  func.func @transform_0(%arg0: i32) -> (i32, i32) {
    %c0_i32 = arith.constant 0 : i32
    %c0_i32_0 = arith.constant 0 : i32
    return %arg0, %c0_i32 : i32, i32
  }
  func.func @transform_1(%arg0: i32) -> (i32, i32) {
    %c0_i32 = arith.constant 0 : i32
    %c0_i32_0 = arith.constant 0 : i32
    %c0_i32_1 = arith.constant 0 : i32
    return %c0_i32, %c0_i32_0 : i32, i32
  }
  func.func @transform_2(%arg0: i32) -> (i32, i32) {
    %c0_i32 = arith.constant 0 : i32
    %c0_i32_0 = arith.constant 0 : i32
    %c0_i32_1 = arith.constant 0 : i32
    return %c0_i32, %c0_i32_0 : i32, i32
  }
  func.func @transform_3(%arg0: i32) -> (i32, i32) {
    %c0_i32 = arith.constant 0 : i32
    %c0_i32_0 = arith.constant 0 : i32
    %c0_i32_1 = arith.constant 0 : i32
    return %c0_i32, %c0_i32_0 : i32, i32
  }
  func.func @transform_4(%arg0: i32) -> (i32, i32) {
    %c0_i32 = arith.constant 0 : i32
    %c0_i32_0 = arith.constant 0 : i32
    %c0_i32_1 = arith.constant 0 : i32
    return %c0_i32, %c0_i32_0 : i32, i32
  }
  func.func @transform_5(%arg0: i32) -> (i32, i32) {
    %c0_i32 = arith.constant 0 : i32
    %c0_i32_0 = arith.constant 0 : i32
    return %arg0, %c0_i32 : i32, i32
  }
}

</mosaic_0001>

<llo_original>
// kernel: tpu_custom_call.1
$region0: #{tpu_custom_call.1}
  #allocation0 [shape = 'u32[]', space=smem, size = 0x4, offset = 0x4, fixed_abs, tag = 'smem constant byte address 0x4 - core index']
  #allocation1 [shape = 'u32[144,128]{1,0:T(1,128)}', space=vmem, size = 0x12000, scoped, tag = 'internal scratch']
  #allocation2 [shape = 'f32[1,1]{1,0:T(1,128)S(1)}', space=vmem, size = 0x200, scoped, tag = 'scoped memory for tpu_custom_call.1']
  %s0 = inlined_call_operand.vmem [shape: f32[8,32], index: 0, kind: input, shape index: {}]
  %s1 = inlined_call_operand.vmem [shape: f32[32,8], index: 1, kind: input, shape index: {}]
  %s2 = inlined_call_operand.vmem [shape: f32[1,8], index: 2, kind: input, shape index: {}]
  %s3 = inlined_call_operand.vmem [shape: f32[8,1], index: 3, kind: input, shape index: {}]
  %s4 = inlined_call_operand.<no memory space> [shape: f32[1,1], index: 4, kind: input, shape index: {}]
  %s5 = inlined_call_operand.vmem [shape: f32[8,1], index: 5, kind: output, shape index: {}]
  %s6 = sld [smem:[#allocation0]]
  $region30: #{tpu_custom_call.1} parent=0
    _
  %s8 = ssub.s32 1, %s6
  %s9 = scalar_select 0, %s8, %s6
  %v10 = vstv %s4
  %11 = vst [vmem:[#allocation2] sm:$0x1] %v10
  // Predicated region
  $region2: #{tpu_custom_call.1} parent=0 // pred_check
    _
  $region3: #{tpu_custom_call.1} parent=0 // pred_check_branch
    %13 = sbr.rel (0) target = $region5
  $region4: #{tpu_custom_call.1} parent=0 // pred_region
    _
  $region5: #{tpu_custom_call.1} parent=0 // pred_fallthru
    _
  // Predicated region
  $region6: #{tpu_custom_call.1} parent=0 // pred_check
    _
  $region7: #{tpu_custom_call.1} parent=0 // pred_check_branch
    %15 = sbr.rel (0) target = $region9
  $region8: #{tpu_custom_call.1} parent=0 // pred_region
    _
  $region9: #{tpu_custom_call.1} parent=0 // pred_fallthru
    _
  // Predicated region
  $region10: #{tpu_custom_call.1} parent=0 // pred_check
    _
  $region11: #{tpu_custom_call.1} parent=0 // pred_check_branch
    %17 = sbr.rel (0) target = $region13
  $region12: #{tpu_custom_call.1} parent=0 // pred_region
    _
  $region13: #{tpu_custom_call.1} parent=0 // pred_fallthru
    _
  // Predicated region
  $region14: #{tpu_custom_call.1} parent=0 // pred_check
    _
  $region15: #{tpu_custom_call.1} parent=0 // pred_check_branch
    %19 = sbr.rel (0) target = $region17
  $region16: #{tpu_custom_call.1} parent=0 // pred_region
    _
  $region17: #{tpu_custom_call.1} parent=0 // pred_fallthru
    _
  // Predicated region
  $region18: #{tpu_custom_call.1} parent=0 // pred_check
    _
  $region19: #{tpu_custom_call.1} parent=0 // pred_check_branch
    %21 = sbr.rel (0) target = $region21
  $region20: #{tpu_custom_call.1} parent=0 // pred_region
    _
  $region21: #{tpu_custom_call.1} parent=0 // pred_fallthru
    _
  %v22 = vld [vmem:[%s0] sm:$0xff]
  %v23 = vld [vmem:[%s1] sm:$0xff]
  %v24 = vld [vmem:[%s1 + $0x8] sm:$0xff]
  %v25 = vld [vmem:[%s1 + $0x10] sm:$0xff]
  %v26 = vld [vmem:[%s1 + $0x18] sm:$0xff]
  %v27 = vld [vmem:[%s2] sm:$0x1]
  %v29 = vlaneseq
  %v30 = vshrl.u32 %v29, 7
  %v31 = vsub.s32 0, %v30
  %v32 = vrot.slane %v27, %v31
  %vm34 = vcmask 261120
  %v36 = vsel %vm34, %v22, 0
  %38 = vmatprep.subr.mxu0 0.0
  %39 = vmatpush1.msra.mxu0 %v23
  %40 = vmatprep.subr.mxu0 0.0
  %41 = vmatpush1.msra.mxu0 %v24
  %42 = vmatprep.subr.mxu0 0.0
  %43 = vmatpush1.msra.mxu0 %v25
  %44 = vmatprep.subr.mxu0 0.0
  %45 = vmatpush1.msra.mxu0 %v26
  %46 = vmatprep.subr.mxu0 0.0
  %47 = vmatpush1.msra.mxu0 0.0
  %48 = vmatprep.subr.mxu0 0.0
  %49 = vmatpush1.msra.mxu0 0.0
  %50 = vmatprep.subr.mxu0 0.0
  %51 = vmatpush1.msra.mxu0 0.0
  %52 = vmatprep.subr.mxu0 0.0
  %53 = vmatpush1.msra.mxu0 0.0
  %54 = vmatprep.subr.mxu0 0.0
  %55 = vmatpush1.msra.mxu0 0.0
  %56 = vmatprep.subr.mxu0 0.0
  %57 = vmatpush1.msra.mxu0 0.0
  %58 = vmatprep.subr.mxu0 0.0
  %59 = vmatpush1.msra.mxu0 0.0
  %60 = vmatprep.subr.mxu0 0.0
  %61 = vmatpush1.msra.mxu0 0.0
  %62 = vmatprep.subr.mxu0 0.0
  %63 = vmatpush1.msra.mxu0 0.0
  %64 = vmatprep.subr.mxu0 0.0
  %65 = vmatpush1.msra.mxu0 0.0
  %66 = vmatprep.subr.mxu0 0.0
  %67 = vmatpush1.msra.mxu0 0.0
  %68 = vmatprep.subr.mxu0 0.0
  %69 = vmatpush1.msra.mxu0 0.0
  %70 = vmatprep.subr.mxu0 0.0
  %71 = vmatpush1.msra.mxu0 0.0
  %72 = vmatprep.subr.mxu0 0.0
  %73 = vmatpush1.msra.mxu0 0.0
  %74 = vmatprep.subr.mxu0 0.0
  %75 = vmatpush1.msra.mxu0 0.0
  %76 = vmatprep.subr.mxu0 0.0
  %77 = vmatpush1.msra.mxu0 0.0
  %78 = vmatprep.subr.mxu0 0.0
  %79 = vmatpush1.msra.mxu0 0.0
  %80 = vmatprep.subr.mxu0 0.0
  %81 = vmatpush1.msra.mxu0 0.0
  %82 = vmatprep.subr.mxu0 0.0
  %83 = vmatpush1.msra.mxu0 0.0
  %84 = vmatprep.subr.mxu0 0.0
  %85 = vmatpush1.msra.mxu0 0.0
  %86 = vmatprep.subr.mxu0 0.0
  %87 = vmatpush1.msra.mxu0 0.0
  %88 = vmatprep.subr.mxu0 0.0
  %89 = vmatpush1.msra.mxu0 0.0
  %90 = vmatprep.subr.mxu0 0.0
  %91 = vmatpush1.msra.mxu0 0.0
  %92 = vmatprep.subr.mxu0 0.0
  %93 = vmatpush1.msra.mxu0 0.0
  %94 = vmatprep.subr.mxu0 0.0
  %95 = vmatpush1.msra.mxu0 0.0
  %96 = vmatprep.subr.mxu0 0.0
  %97 = vmatpush1.msra.mxu0 0.0
  %98 = vmatprep.subr.mxu0 0.0
  %99 = vmatpush1.msra.mxu0 0.0
  %100 = vmatprep.subr.mxu0 0.0
  %101 = vmatpush1.msra.mxu0 0.0
  %102 = vmatprep.mubr.f32.mxu0 0.0
  %103 = vmatmul.mubr.f32.gmra.mrb[0].mxu0 %v36
  %v104 = vpop.f32.mrb[0].mxu0
  %v105 = vadd.f32 %v32, %v104
  %v106 = vpop.f32.mrb[0].mxu0
  %107 = vdwg.mxu0
  %v108 = vmax.f32 %v105, 0.0
  %v109 = vld [vmem:[%s3] sm:$0xff]
  %v110 = vld [vmem:[#allocation2] sm:$0x1]
  %v112 = vlaneseq
  %v113 = vshrl.u32 %v112, 7
  %v114 = vsub.s32 0, %v113
  %v115 = vrot.slane %v110, %v114
  %vm117 = vcmask 64512
  %v119 = vsel %vm117, %v108, 0
  %121 = vmatprep.subr.mxu0 0.0
  %122 = vmatpush1.msra.mxu0 %v109
  %123 = vmatprep.subr.mxu0 0.0
  %124 = vmatpush1.msra.mxu0 0.0
  %125 = vmatprep.subr.mxu0 0.0
  %126 = vmatpush1.msra.mxu0 0.0
  %127 = vmatprep.subr.mxu0 0.0
  %128 = vmatpush1.msra.mxu0 0.0
  %129 = vmatprep.subr.mxu0 0.0
  %130 = vmatpush1.msra.mxu0 0.0
  %131 = vmatprep.subr.mxu0 0.0
  %132 = vmatpush1.msra.mxu0 0.0
  %133 = vmatprep.subr.mxu0 0.0
  %134 = vmatpush1.msra.mxu0 0.0
  %135 = vmatprep.subr.mxu0 0.0
  %136 = vmatpush1.msra.mxu0 0.0
  %137 = vmatprep.subr.mxu0 0.0
  %138 = vmatpush1.msra.mxu0 0.0
  %139 = vmatprep.subr.mxu0 0.0
  %140 = vmatpush1.msra.mxu0 0.0
  %141 = vmatprep.subr.mxu0 0.0
  %142 = vmatpush1.msra.mxu0 0.0
  %143 = vmatprep.subr.mxu0 0.0
  %144 = vmatpush1.msra.mxu0 0.0
  %145 = vmatprep.subr.mxu0 0.0
  %146 = vmatpush1.msra.mxu0 0.0
  %147 = vmatprep.subr.mxu0 0.0
  %148 = vmatpush1.msra.mxu0 0.0
  %149 = vmatprep.subr.mxu0 0.0
  %150 = vmatpush1.msra.mxu0 0.0
  %151 = vmatprep.subr.mxu0 0.0
  %152 = vmatpush1.msra.mxu0 0.0
  %153 = vmatprep.subr.mxu0 0.0
  %154 = vmatpush1.msra.mxu0 0.0
  %155 = vmatprep.subr.mxu0 0.0
  %156 = vmatpush1.msra.mxu0 0.0
  %157 = vmatprep.subr.mxu0 0.0
  %158 = vmatpush1.msra.mxu0 0.0
  %159 = vmatprep.subr.mxu0 0.0
  %160 = vmatpush1.msra.mxu0 0.0
  %161 = vmatprep.subr.mxu0 0.0
  %162 = vmatpush1.msra.mxu0 0.0
  %163 = vmatprep.subr.mxu0 0.0
  %164 = vmatpush1.msra.mxu0 0.0
  %165 = vmatprep.subr.mxu0 0.0
  %166 = vmatpush1.msra.mxu0 0.0
  %167 = vmatprep.subr.mxu0 0.0
  %168 = vmatpush1.msra.mxu0 0.0
  %169 = vmatprep.subr.mxu0 0.0
  %170 = vmatpush1.msra.mxu0 0.0
  %171 = vmatprep.subr.mxu0 0.0
  %172 = vmatpush1.msra.mxu0 0.0
  %173 = vmatprep.subr.mxu0 0.0
  %174 = vmatpush1.msra.mxu0 0.0
  %175 = vmatprep.subr.mxu0 0.0
  %176 = vmatpush1.msra.mxu0 0.0
  %177 = vmatprep.subr.mxu0 0.0
  %178 = vmatpush1.msra.mxu0 0.0
  %179 = vmatprep.subr.mxu0 0.0
  %180 = vmatpush1.msra.mxu0 0.0
  %181 = vmatprep.subr.mxu0 0.0
  %182 = vmatpush1.msra.mxu0 0.0
  %183 = vmatprep.subr.mxu0 0.0
  %184 = vmatpush1.msra.mxu0 0.0
  %185 = vmatprep.mubr.f32.mxu0 0.0
  %186 = vmatmul.mubr.f32.gmra.mrb[0].mxu0 %v119
  %v187 = vpop.f32.mrb[0].mxu0
  %v188 = vadd.f32 %v115, %v187
  %v189 = vpop.f32.mrb[0].mxu0
  %190 = vdwg.mxu0
  %vm191 = vcmask 7168
  %192 = vst.msk [vmem:[%s5] sm:$0xff] %vm191, %v188
  // Predicated region
  $region22: #{tpu_custom_call.1} parent=0 // pred_check
    _
  $region23: #{tpu_custom_call.1} parent=0 // pred_check_branch
    %194 = sbr.rel (0) target = $region25
  $region24: #{tpu_custom_call.1} parent=0 // pred_region
    _
  $region25: #{tpu_custom_call.1} parent=0 // pred_fallthru
    _
  // Predicated region
  $region26: #{tpu_custom_call.1} parent=0 // pred_check
    _
  $region27: #{tpu_custom_call.1} parent=0 // pred_check_branch
    %196 = sbr.rel (0) target = $region29
  $region28: #{tpu_custom_call.1} parent=0 // pred_region
    _
  $region29: #{tpu_custom_call.1} parent=0 // pred_fallthru
    _

</llo_original>
